<compile_context>
chip_gen: v7x
topology: tpu7x:2x2x1
jax: 0.10.0
libtpu: 0.0.40
codegen_flags: <defaults>
</compile_context>

<pallas_src>
import functools
import math

import jax
import jax.numpy as jnp
import numpy as np
from jax import lax
from jax.experimental import pallas as pl
from jax.experimental.pallas import tpu as pltpu

F32 = jnp.float32


def _round_up(n, m):
    return ((n + m - 1) // m) * m


# --------------------------------------------------------------------------
# Kernel 1: DFT projections (real / imag) for the selected frequency bins.
# --------------------------------------------------------------------------

def dft_kernel(x_ref, trig_ref, re_ref, im_ref, acc_ref, *, fs_pad):
    """One (b, c-tile) output block, accumulated over the T ("arbitrary") grid axis.

    x_ref   : (1, tk, tc)          time-major input block
    trig_ref: (tk, 2*fs_pad)       [cos | sin] DFT matrix block (fs_pad % 128 == 0)
    re_ref  : (1, tc, fs_pad)      Re X_k   (written on the last T step)
    im_ref  : (1, tc, fs_pad)      Im X_k   (written on the last T step)
    acc_ref : (tc, 2*fs_pad) f32   VMEM accumulator
    """
    kt = pl.program_id(2)

    @pl.when(kt == 0)
    def _():
        acc_ref[...] = jnp.zeros_like(acc_ref)

    # (tc, 2*fs_pad) = x_block^T @ trig_block  (lhs-transposed MXU matmul).  The output
    # lane dim is 2*fs_pad (>= 256), so the MXU work and the stores are fully lane-dense
    # even when C < 128.
    acc_ref[...] += lax.dot_general(
        x_ref[0], trig_ref[...],
        dimension_numbers=(((0,), (0,)), ((), ())),
        preferred_element_type=jnp.float32)

    @pl.when(kt == pl.num_programs(2) - 1)
    def _():
        proj = acc_ref[...]
        re_ref[0] = proj[:, :fs_pad]        #  sum_t x[t] * cos(2 pi k t / T)
        im_ref[0] = -proj[:, fs_pad:]       # -sum_t x[t] * sin(...)  == Im(rfft)


def rfft_selected(x, trig, *, fs_pad, tc, tk):
    """x: (B, T_pad, C) -> (re, im), each (B, C, fs_pad) float32."""
    B, T_pad, C = x.shape
    n_c, n_k = C // tc, T_pad // tk
    kern = functools.partial(dft_kernel, fs_pad=fs_pad)
    out_spec = pl.BlockSpec((1, tc, fs_pad), lambda b, c, k: (b, c, 0))
    return pl.pallas_call(
        kern,
        grid=(B, n_c, n_k),
        in_specs=[
            pl.BlockSpec((1, tk, tc), lambda b, c, k: (b, k, c)),
            pl.BlockSpec((tk, 2 * fs_pad), lambda b, c, k: (k, 0)),
        ],
        out_specs=[out_spec, out_spec],
        out_shape=(
            jax.ShapeDtypeStruct((B, C, fs_pad), F32),
            jax.ShapeDtypeStruct((B, C, fs_pad), F32),
        ),
        scratch_shapes=[pltpu.VMEM((tc, 2 * fs_pad), jnp.float32)],
        compiler_params=pltpu.CompilerParams(
            dimension_semantics=("parallel", "parallel", "arbitrary"),
            vmem_limit_bytes=32 * 1024 * 1024),
    )(x, trig)


# --------------------------------------------------------------------------
# Kernel 2: inverse-DFT seasonal reconstruction.
# --------------------------------------------------------------------------

def season_kernel(amp2_ref, w_ref, ph_ref, o_ref, *, t_len, top_k):
    """o[t, c] = sum_j amp2[j, c] * cos(w[j, c] * t + ph[j, c]).

    amp2 = 2*|X_k| and w = 2*pi*f are pre-folded on the host.  top_k is a small static
    Python int (2-4): the loop is fully unrolled with static indices and only one
    (T, tc) slab is ever live (no (k, T, C) intermediate to spill).
    """
    t_idx = lax.broadcasted_iota(F32, (t_len, 1), 0)     # hoisted out of the loop
    amp2 = amp2_ref[0]                                   # (k, tc)
    w = w_ref[0]
    ph = ph_ref[0]
    acc = jnp.zeros((t_len, amp2.shape[-1]), F32)
    for j in range(top_k):
        acc = acc + amp2[j:j + 1, :] * jnp.cos(w[j:j + 1, :] * t_idx + ph[j:j + 1, :])
    o_ref[0] = acc


def season_extrapolate(amp2, w, ph, t_len):
    B, k, C = amp2.shape
    tc = 128 if (C % 128 == 0) else C                    # parallel C tiles (helps B==1)
    n_c = C // tc
    kern = functools.partial(season_kernel, t_len=t_len, top_k=k)
    in_spec = pl.BlockSpec((1, k, tc), lambda b, c: (b, 0, c))
    return pl.pallas_call(
        kern,
        grid=(B, n_c),
        in_specs=[in_spec, in_spec, in_spec],
        out_specs=pl.BlockSpec((1, t_len, tc), lambda b, c: (b, 0, c)),
        out_shape=jax.ShapeDtypeStruct((B, t_len, C), F32),
        compiler_params=pltpu.CompilerParams(
            dimension_semantics=("parallel", "parallel")),
    )(amp2, w, ph)


# --------------------------------------------------------------------------
# Host-side constants (built once per (T, low_freq, tiling), cached).
# --------------------------------------------------------------------------

@functools.lru_cache(maxsize=16)
def _dft_constants(t_len, low_freq, t_pad, fs_pad, dtype_name):
    if t_len % 2 == 0:
        k_bins = np.arange(low_freq, t_len // 2)          # x_freq[:, low_freq:-1]
    else:
        k_bins = np.arange(low_freq, (t_len + 1) // 2)    # x_freq[:, low_freq:]
    fs = k_bins.shape[0]
    tt = np.arange(t_len, dtype=np.float64)
    ang = (2.0 * np.pi / t_len) * k_bins[:, None].astype(np.float64) * tt[None, :]
    trig = np.zeros((t_pad, 2 * fs_pad), np.float32)      # zero rows/cols: padding
    trig[:t_len, :fs] = np.cos(ang).T                     # cos block
    trig[:t_len, fs_pad:fs_pad + fs] = np.sin(ang).T      # sin block (lane-aligned split)
    freqs = (k_bins.astype(np.float64) / t_len).astype(np.float32)   # rfftfreq bins
    return jnp.asarray(trig, dtype=jnp.dtype(dtype_name)), jnp.asarray(freqs)


# --------------------------------------------------------------------------
# FourierLayer forward.
# --------------------------------------------------------------------------

def fourier_layer(x, low_freq=1, factor=1, compute_dtype=jnp.float32):
    """Forward pass of FourierLayer.  x: (B, T, C) float32 -> (B, T, C) float32.

    compute_dtype=jnp.bfloat16 halves the DFT matmul + DMA cost on v6e/v7x (f32
    accumulation is kept); float32 (default) tracks the PyTorch reference numerics.
    """
    B, T, C = x.shape
    fs = (T // 2 if T % 2 == 0 else (T + 1) // 2) - low_freq
    assert fs >= 1, "no frequency bins selected"

    fs_pad = _round_up(fs, 128)             # lane-align the re/im split (128, not 8)
    tk = T if T <= 512 else 512             # contraction tile over T (VMEM-bounded)
    t_pad = _round_up(T, tk)
    tc = 128 if (C % 128 == 0) else C       # parallel C tiles

    trig, freqs = _dft_constants(T, low_freq, t_pad, fs_pad,
                                 jnp.dtype(compute_dtype).name)

    x_in = x.astype(compute_dtype)
    if t_pad != T:                          # zero time-padding: contributes nothing
        x_in = jnp.pad(x_in, ((0, 0), (0, t_pad - T), (0, 0)))

    re, im = rfft_selected(x_in, trig, fs_pad=fs_pad, tc=tc, tk=tk)   # (B, C, fs_pad)

    # Reference: top_k = int(factor * log(#selected bins)); clamp to [1, fs] so tiny-T
    # degenerate cases stay well defined.
    top_k = min(fs, max(1, int(factor * math.log(fs))))

    # TODO(synk): per-(b, d) top-k bin selection + gather stays in plain JAX
    # (lax.top_k / take_along_axis); there is no clean Pallas gather for this pattern.
    re_v = re[:, :, :fs]
    im_v = im[:, :, :fs]
    sq = re_v * re_v + im_v * im_v                       # |X|^2 (monotone in |X|)
    vals, idx = lax.top_k(sq, top_k)                     # (B, C, k), last-axis top-k
    amp = jnp.sqrt(vals)                                 # |X_k| at the selected bins
    re_s = jnp.take_along_axis(re_v, idx, axis=-1)
    im_s = jnp.take_along_axis(im_v, idx, axis=-1)
    phase = jnp.arctan2(im_s, re_s)                      # == torch .angle(); tiny array
    f_sel = freqs[idx]                                   # rfftfreq at the selected bins

    # Conjugate-pair term folded into a factor 2 (cos is even); constants folded out of
    # the kernel: amp2 = 2*|X|, w = 2*pi*f.  These (B, C, k) -> (B, k, C) transposes are
    # over tiny top-k-sized arrays.
    amp2 = jnp.transpose(2.0 * amp, (0, 2, 1)).astype(F32)
    w = jnp.transpose((2.0 * math.pi) * f_sel, (0, 2, 1)).astype(F32)
    ph = jnp.transpose(phase, (0, 2, 1)).astype(F32)

    return season_extrapolate(amp2, w, ph, T)            # (B, T, C)


# --------------------------------------------------------------------------
# main
# --------------------------------------------------------------------------

if __name__ == "__main__":
    B, T, C = 2, 32, 32                                   # (batch, seq, n_embd)
    key = jax.random.PRNGKey(0)
    x = jax.random.normal(key, (B, T, C), dtype=F32)

    season = jax.block_until_ready(fourier_layer(x, low_freq=1, factor=1))

    assert season.shape == (B, T, C)
    assert bool(jnp.all(jnp.isfinite(season)))
    print("KERNEL_OK")
</pallas_src>

<mosaic_0001>
module attributes {stable_mosaic.version = 11 : i64} {
  func.func @dft_kernel(%arg0: i32, %arg1: i32, %arg2: i32, %arg3: memref<1x32x32xf32, #tpu.memory_space<vmem>>, %arg4: memref<32x256xf32, #tpu.memory_space<vmem>>, %arg5: memref<1x32x128xf32, #tpu.memory_space<vmem>>, %arg6: memref<1x32x128xf32, #tpu.memory_space<vmem>>, %arg7: memref<32x256xf32, #tpu.memory_space<vmem>>) attributes {dimension_semantics = [#tpu.dimension_semantics<parallel>, #tpu.dimension_semantics<parallel>, #tpu.dimension_semantics<arbitrary>], iteration_bounds = array<i64: 2, 1, 1>, scalar_prefetch = 0 : i64, scratch_operands = 1 : i64, tpu.core_type = #tpu.core_type<tc>, window_params = [{transform_indices = @transform_0, window_bounds = array<i64: 1, 32, 32>}, {transform_indices = @transform_1, window_bounds = array<i64: 32, 256>}, {transform_indices = @transform_2, window_bounds = array<i64: 1, 32, 128>}, {transform_indices = @transform_3, window_bounds = array<i64: 1, 32, 128>}]} {
    %c0_i32 = arith.constant 0 : i32
    %0 = arith.cmpi eq, %arg2, %c0_i32 : i32
    %1 = arith.extui %0 : i1 to i32
    %c0_i32_0 = arith.constant 0 : i32
    %2 = arith.cmpi ne, %1, %c0_i32_0 : i32
    scf.if %2 {
      %cst_11 = arith.constant 0.000000e+00 : f32
      %13 = vector.broadcast %cst_11 : f32 to vector<32x256xf32>
      %c0_12 = arith.constant 0 : index
      %c0_13 = arith.constant 0 : index
      %14 = vector.load %arg7[%c0_12, %c0_13] : memref<32x256xf32, #tpu.memory_space<vmem>>, vector<32x256xf32>
      tpu.vector_store %arg7[%c0_12, %c0_13], %13 {strides = array<i32>} : memref<32x256xf32, #tpu.memory_space<vmem>>, vector<32x256xf32>,
    } else {
    }
    %c0 = arith.constant 0 : index
    %c0_1 = arith.constant 0 : index
    %3 = vector.load %arg7[%c0, %c0_1] : memref<32x256xf32, #tpu.memory_space<vmem>>, vector<32x256xf32>
    %c0_2 = arith.constant 0 : index
    %c0_3 = arith.constant 0 : index
    %c0_4 = arith.constant 0 : index
    %4 = vector.load %arg3[%c0_2, %c0_3, %c0_4] : memref<1x32x32xf32, #tpu.memory_space<vmem>>, vector<1x32x32xf32>
    %5 = vector.shape_cast %4 : vector<1x32x32xf32> to vector<32x32xf32>
    %c0_5 = arith.constant 0 : index
    %c0_6 = arith.constant 0 : index
    %6 = vector.load %arg4[%c0_5, %c0_6] : memref<32x256xf32, #tpu.memory_space<vmem>>, vector<32x256xf32>
    %cst = arith.constant dense<0.000000e+00> : vector<32x256xf32>
    %7 = tpu.matmul %5, %6, %cst {dimension_numbers = #tpu.dot_dimension_numbers<[0], [0], [1], [1], [0, 1, 1, 1], [], []>} : vector<32x32xf32>, vector<32x256xf32>, vector<32x256xf32> -> vector<32x256xf32>
    %8 = arith.addf %3, %7 : vector<32x256xf32>
    %c0_7 = arith.constant 0 : index
    %c0_8 = arith.constant 0 : index
    %9 = vector.load %arg7[%c0_7, %c0_8] : memref<32x256xf32, #tpu.memory_space<vmem>>, vector<32x256xf32>
    tpu.vector_store %arg7[%c0_7, %c0_8], %8 {strides = array<i32>} : memref<32x256xf32, #tpu.memory_space<vmem>>, vector<32x256xf32>,
    %c0_i32_9 = arith.constant 0 : i32
    %10 = arith.cmpi eq, %arg2, %c0_i32_9 : i32
    %11 = arith.extui %10 : i1 to i32
    %c0_i32_10 = arith.constant 0 : i32
    %12 = arith.cmpi ne, %11, %c0_i32_10 : i32
    scf.if %12 {
      %c0_11 = arith.constant 0 : index
      %c0_12 = arith.constant 0 : index
      %13 = vector.load %arg7[%c0_11, %c0_12] : memref<32x256xf32, #tpu.memory_space<vmem>>, vector<32x256xf32>
      %14 = vector.extract_strided_slice %13 {offsets = [0, 0], sizes = [32, 128], strides = [1, 1]} : vector<32x256xf32> to vector<32x128xf32>
      %c0_13 = arith.constant 0 : index
      %c0_14 = arith.constant 0 : index
      %c0_15 = arith.constant 0 : index
      %15 = vector.load %arg5[%c0_13, %c0_14, %c0_15] : memref<1x32x128xf32, #tpu.memory_space<vmem>>, vector<1x32x128xf32>
      %16 = vector.shape_cast %15 : vector<1x32x128xf32> to vector<32x128xf32>
      %17 = vector.shape_cast %14 : vector<32x128xf32> to vector<1x32x128xf32>
      tpu.vector_store %arg5[%c0_13, %c0_14, %c0_15], %17 {strides = array<i32>} : memref<1x32x128xf32, #tpu.memory_space<vmem>>, vector<1x32x128xf32>,
      %18 = vector.extract_strided_slice %13 {offsets = [0, 128], sizes = [32, 128], strides = [1, 1]} : vector<32x256xf32> to vector<32x128xf32>
      %cst_16 = arith.constant 0.000000e+00 : f32
      %19 = vector.broadcast %cst_16 : f32 to vector<32x128xf32>
      %20 = arith.subf %19, %18 : vector<32x128xf32>
      %c0_17 = arith.constant 0 : index
      %c0_18 = arith.constant 0 : index
      %c0_19 = arith.constant 0 : index
      %21 = vector.load %arg6[%c0_17, %c0_18, %c0_19] : memref<1x32x128xf32, #tpu.memory_space<vmem>>, vector<1x32x128xf32>
      %22 = vector.shape_cast %21 : vector<1x32x128xf32> to vector<32x128xf32>
      %23 = vector.shape_cast %20 : vector<32x128xf32> to vector<1x32x128xf32>
      tpu.vector_store %arg6[%c0_17, %c0_18, %c0_19], %23 {strides = array<i32>} : memref<1x32x128xf32, #tpu.memory_space<vmem>>, vector<1x32x128xf32>,
    } else {
    }
    return
  }
  func.func @transform_0(%arg0: i32, %arg1: i32, %arg2: i32) -> (i32, i32, i32) {
    %c0_i32 = arith.constant 0 : i32
    return %arg0, %arg2, %arg1 : i32, i32, i32
  }
  func.func @transform_1(%arg0: i32, %arg1: i32, %arg2: i32) -> (i32, i32) {
    %c0_i32 = arith.constant 0 : i32
    %c0_i32_0 = arith.constant 0 : i32
    return %arg2, %c0_i32 : i32, i32
  }
  func.func @transform_2(%arg0: i32, %arg1: i32, %arg2: i32) -> (i32, i32, i32) {
    %c0_i32 = arith.constant 0 : i32
    %c0_i32_0 = arith.constant 0 : i32
    return %arg0, %arg1, %c0_i32 : i32, i32, i32
  }
  func.func @transform_3(%arg0: i32, %arg1: i32, %arg2: i32) -> (i32, i32, i32) {
    %c0_i32 = arith.constant 0 : i32
    %c0_i32_0 = arith.constant 0 : i32
    return %arg0, %arg1, %c0_i32 : i32, i32, i32
  }
}

</mosaic_0001>

<llo_original>
// kernel: tpu_custom_call.1
$region0: #{tpu_custom_call.1}
  #allocation0 [shape = 'u32[]', space=smem, size = 0x4, offset = 0x4, fixed_abs, tag = 'smem constant byte address 0x4 - core index']
  #allocation1 [shape = 'u32[144,128]{1,0:T(1,128)}', space=vmem, size = 0x12000, scoped, tag = 'internal scratch']
  #allocation2 [shape = 'f32[32,256]{1,0:T(8,128)}', space=vmem, size = 0x8000, scoped, tag = 'scratch operand']
  %s0 = inlined_call_operand.hbm [shape: f32[2,32,32], index: 0, kind: input, shape index: {}]
  %s1 = inlined_call_operand.hbm [shape: f32[32,256], index: 1, kind: input, shape index: {}]
  %s2 = inlined_call_operand.hbm [shape: f32[2,32,128], index: 2, kind: output, shape index: {0}]
  %s3 = inlined_call_operand.hbm [shape: f32[2,32,128], index: 3, kind: output, shape index: {1}]
  %4 = xla_tuple %s2, %s3
  %s5 = sld [smem:[#allocation0]]
  $region65: #{tpu_custom_call.1} parent=0
    _
  %s7 = ssub.s32 1, %s5
  %s8 = scalar_select 0, %s7, %s5
  $region1: #{tpu_custom_call.1} parent=0
    #allocation3 [shape = 'u8[32768]{0}', space=vmem, size = 0x8000, scoped, tag = 'input window, operand 0']
    #allocation4 [shape = 's32[2]{0}', space=sflag, size = 0x8, scoped, tag = 'scoped memory for tpu_custom_call.1']
    #allocation5 [shape = 's32[2]{0}', space=sflag, size = 0x8, scoped, tag = 'scoped memory for tpu_custom_call.1']
    #allocation6 [shape = 'u8[32768]{0}', space=vmem, size = 0x8000, scoped, tag = 'input window, operand 1, single buffered']
    #allocation7 [shape = 's32[1]{0}', space=sflag, size = 0x4, scoped, tag = 'scoped memory for tpu_custom_call.1']
    #allocation8 [shape = 'u8[32768]{0}', space=vmem, size = 0x8000, scoped, tag = 'output window, operand 0']
    #allocation9 [shape = 'u8[32768]{0}', space=vmem, size = 0x8000, scoped, tag = 'output window, operand 1']
    #allocation10 [shape = 's32[2]{0}', space=sflag, size = 0x8, scoped, tag = 'scoped memory for tpu_custom_call.1']
    %9 = vsyncpa [#allocation4], 0
    %s10 = scalar_lea.sflag [#allocation4], 1
    %11 = vsyncpa %s10, 0
    %12 = vsyncpa [#allocation7], 0
    %13 = vsyncpa [#allocation5], 0
    %s14 = scalar_lea.sflag [#allocation5], 1
    %15 = vsyncpa %s14, 0
    %16 = vsyncpa [#allocation10], 0
    %s17 = scalar_lea.sflag [#allocation10], 1
    %18 = vsyncpa %s17, 0
    loop: start=0, step=1, limit=4
    $region2: #{tpu_custom_call.1} parent=1 // loop_pre_header
      _
    $region3: #{tpu_custom_call.1} parent=1 // loop_header
      %s20 = sphi 0, %s24
      %p21 = scmp.ge.s32.totalorder %s20, 4
      %s27 = sphi 0, %s46
      %s28 = sphi 0, %s42
      %s29 = sphi 0, %s38
      %s30 = sphi 0, %s27
      %s31 = sphi 0, %s28
      %s32 = sphi 0, %s29
      %s33 = sphi 0, %s30
      %s34 = sphi 0, %s31
      %s35 = sphi 0, %s32
      %s53 = sphi 0, %s55
      %s56 = sphi 0, %s53
      %s57 = sphi 0, %s56
      %s73 = sphi 0, %s57
      %s79 = sphi 0, %s81
      %s82 = sphi 0, %s79
      %s83 = sphi 0, %s82
      %s99 = sphi 0, %s83
      %s107 = sphi 0, %s109
      %s110 = sphi 0, %s107
      %s111 = sphi 0, %s110
      %s127 = sphi 0, %s111
      %s135 = sphi 0, %s137
      %s138 = sphi 0, %s135
      %s139 = sphi 0, %s138
      %s155 = sphi 0, %s139
    $region4: #{tpu_custom_call.1} parent=1 // loop_header_branch
      %23 = sbr.rel (%p21) target = $region8
    $region5: #{tpu_custom_call.1} parent=1 // loop_body
      %s25 = ssub.s32 %s20, 1
      %s26 = ssub.s32 %s20, 2
      %s36 = sadd.s32 1, %s29
      %p37 = scmp.ge.s32.totalorder %s36, 1
      %s38 = scalar_select %p37, 0, %s36
      %s39 = sadd.s32 1, %s28
      %s40 = scalar_select %p37, %s39, %s28
      %p41 = scmp.ge.s32.totalorder %s40, 1
      %s42 = scalar_select %p41, 0, %s40
      %s43 = sadd.s32 1, %s27
      %s44 = scalar_select %p41, %s43, %s27
      %p45 = scmp.ge.s32.totalorder %s44, 2
      %s46 = scalar_select %p45, 0, %s44
      %s47 = ssub.s32 %s27, %s46
      %s48 = ssub.s32 %s29, %s38
      %s49 = sor.u32 %s47, %s48
      %s50 = ssub.s32 %s28, %s42
      %s51 = sor.u32 %s49, %s50
      %p52 = scmp.eq.s32.totalorder %s51, 0
      %s54 = sadd.s32 %s53, 1
      %s55 = scalar_select %p52, %s53, %s54
      %p58 = pneg %p52
      %p59 = scmp.eq.s32.totalorder %s20, 1
      %p60 = por %p58, %p59
      %p61 = scmp.ne.s32.totalorder %s53, %s56
      %p62 = scmp.eq.s32.totalorder %s20, 0
      %p63 = por %p61, %p62
      %p64 = scmp.ne.s32.totalorder %s53, %s56
      %p65 = scmp.eq.s32.totalorder %s25, 1
      %p66 = por %p64, %p65
      %p67 = scmp.ne.s32.totalorder %s56, %s57
      %p68 = scmp.eq.s32.totalorder %s25, 0
      %p69 = por %p67, %p68
      %p70 = scmp.ne.s32.totalorder %s56, %s57
      %p71 = scmp.eq.s32.totalorder %s26, 1
      %p72 = por %p70, %p71
      %p74 = scmp.ne.s32.totalorder %s57, %s73
      %p75 = scmp.eq.s32.totalorder %s26, 0
      %p76 = por %p74, %p75
      %s77 = ssub.s32 %s29, %s38
      %p78 = scmp.eq.s32.totalorder %s77, 0
      %s80 = sadd.s32 %s79, 1
      %s81 = scalar_select %p78, %s79, %s80
      %p84 = pneg %p78
      %p85 = scmp.eq.s32.totalorder %s20, 1
      %p86 = por %p84, %p85
      %p87 = scmp.ne.s32.totalorder %s79, %s82
      %p88 = scmp.eq.s32.totalorder %s20, 0
      %p89 = por %p87, %p88
      %p90 = scmp.ne.s32.totalorder %s79, %s82
      %p91 = scmp.eq.s32.totalorder %s25, 1
      %p92 = por %p90, %p91
      %p93 = scmp.ne.s32.totalorder %s82, %s83
      %p94 = scmp.eq.s32.totalorder %s25, 0
      %p95 = por %p93, %p94
      %p96 = scmp.ne.s32.totalorder %s82, %s83
      %p97 = scmp.eq.s32.totalorder %s26, 1
      %p98 = por %p96, %p97
      %p100 = scmp.ne.s32.totalorder %s83, %s99
      %p101 = scmp.eq.s32.totalorder %s26, 0
      %p102 = por %p100, %p101
      %s103 = ssub.s32 %s27, %s46
      %s104 = ssub.s32 %s28, %s42
      %s105 = sor.u32 %s103, %s104
      %p106 = scmp.eq.s32.totalorder %s105, 0
      %s108 = sadd.s32 %s107, 1
      %s109 = scalar_select %p106, %s107, %s108
      %p112 = pneg %p106
      %p113 = scmp.eq.s32.totalorder %s20, 1
      %p114 = por %p112, %p113
      %p115 = scmp.ne.s32.totalorder %s107, %s110
      %p116 = scmp.eq.s32.totalorder %s20, 0
      %p117 = por %p115, %p116
      %p118 = scmp.ne.s32.totalorder %s107, %s110
      %p119 = scmp.eq.s32.totalorder %s25, 1
      %p120 = por %p118, %p119
      %p121 = scmp.ne.s32.totalorder %s110, %s111
      %p122 = scmp.eq.s32.totalorder %s25, 0
      %p123 = por %p121, %p122
      %p124 = scmp.ne.s32.totalorder %s110, %s111
      %p125 = scmp.eq.s32.totalorder %s26, 1
      %p126 = por %p124, %p125
      %p128 = scmp.ne.s32.totalorder %s111, %s127
      %p129 = scmp.eq.s32.totalorder %s26, 0
      %p130 = por %p128, %p129
      %s131 = ssub.s32 %s27, %s46
      %s132 = ssub.s32 %s28, %s42
      %s133 = sor.u32 %s131, %s132
      %p134 = scmp.eq.s32.totalorder %s133, 0
      %s136 = sadd.s32 %s135, 1
      %s137 = scalar_select %p134, %s135, %s136
      %p140 = pneg %p134
      %p141 = scmp.eq.s32.totalorder %s20, 1
      %p142 = por %p140, %p141
      %p143 = scmp.ne.s32.totalorder %s135, %s138
      %p144 = scmp.eq.s32.totalorder %s20, 0
      %p145 = por %p143, %p144
      %p146 = scmp.ne.s32.totalorder %s135, %s138
      %p147 = scmp.eq.s32.totalorder %s25, 1
      %p148 = por %p146, %p147
      %p149 = scmp.ne.s32.totalorder %s138, %s139
      %p150 = scmp.eq.s32.totalorder %s25, 0
      %p151 = por %p149, %p150
      %p152 = scmp.ne.s32.totalorder %s138, %s139
      %p153 = scmp.eq.s32.totalorder %s26, 1
      %p154 = por %p152, %p153
      %p156 = scmp.ne.s32.totalorder %s139, %s155
      %p157 = scmp.eq.s32.totalorder %s26, 0
      %p158 = por %p156, %p157
      %p159 = scmp.le.s32.totalorder 1, %s20
      %p160 = scmp.lt.s32.totalorder %s20, 3
      %p161 = pnand %p159, %p160
      %p162 = pneg %p161
      // Predicated region
      $region9: #{tpu_custom_call.1} parent=5 // pred_check
        _
      $region10: #{tpu_custom_call.1} parent=5 // pred_check_branch
        %164 = sbr.rel (%p161) target = $region12
      $region11: #{tpu_custom_call.1} parent=5 // pred_region
        %s165 = ssub.s32 %s20, 1
        // Predicated region
        $region13: #{tpu_custom_call.1} parent=11 // pred_check
          %p166 = pneg %p95
        $region14: #{tpu_custom_call.1} parent=11 // pred_check_branch
          %168 = sbr.rel (%p166) target = $region16
        $region15: #{tpu_custom_call.1} parent=11 // pred_region
          %s169 = smul.u32 4, %s32
          %s171 = ssub.s32 1024, 1024
          %172 = vsyncadd [#allocation7], %s171
          %s173 = smul.addr %s169, 2
          %s174 = smul.addr %s173, 128
          %s175 = scalar_lea.hbm %s1, %s174
          %s176 = sshll.u32 [#allocation6], 4
          %s177 = int_to_ptr.vmem [resolvable:$true] %s176
          %182 = dma.hbm_to_vmem [thread:$0]  %s175, 1024, %s177, [#allocation7], 256, 256, 16
        $region16: #{tpu_custom_call.1} parent=11 // pred_fallthru
          _
      $region12: #{tpu_custom_call.1} parent=5 // pred_fallthru
        _
      %p183 = scmp.lt.s32.totalorder %s20, 2
      // Predicated region
      $region17: #{tpu_custom_call.1} parent=5 // pred_check
        %p184 = pneg %p183
      $region18: #{tpu_custom_call.1} parent=5 // pred_check_branch
        %186 = sbr.rel (%p184) target = $region20
      $region19: #{tpu_custom_call.1} parent=5 // pred_region
        // Predicated region
        $region21: #{tpu_custom_call.1} parent=19 // pred_check
          %p187 = pneg %p63
        $region22: #{tpu_custom_call.1} parent=19 // pred_check_branch
          %189 = sbr.rel (%p187) target = $region24
        $region23: #{tpu_custom_call.1} parent=19 // pred_region
          %s190 = sand.u32 %s53, 1
          %s191 = scalar_lea.sflag [#allocation4], %s190
          %s192 = sand.u32 %s53, 1
          %s193 = smul.addr %s192, 32
          %s194 = scalar_lea.vmem [#allocation3], %s193
          %s195 = smul.u32 4, %s29
          %s197 = ssub.s32 512, 512
          %198 = vsyncadd %s191, %s197
          %s199 = sadd.s32 %s28, %s195
          %s200 = smul.addr %s27, 4
          %s201 = sadd.s32 %s199, %s200
          %s202 = smul.addr %s201, 128
          %s203 = scalar_lea.hbm %s0, %s202
          %s204 = sshll.u32 %s194, 4
          %s205 = int_to_ptr.vmem [resolvable:$true] %s204
          %210 = dma.hbm_to_vmem [thread:$0]  %s203, 512, %s205, %s191, 128, 128, 8
        $region24: #{tpu_custom_call.1} parent=19 // pred_fallthru
          _
      $region20: #{tpu_custom_call.1} parent=5 // pred_fallthru
        _
      %p211 = scmp.le.s32.totalorder 1, %s20
      %p212 = scmp.lt.s32.totalorder %s20, 3
      %p213 = pnand %p211, %p212
      %p214 = pneg %p213
      // Predicated region
      $region25: #{tpu_custom_call.1} parent=5 // pred_check
        _
      $region26: #{tpu_custom_call.1} parent=5 // pred_check_branch
        %216 = sbr.rel (%p213) target = $region28
      $region27: #{tpu_custom_call.1} parent=5 // pred_region
        %s217 = ssub.s32 %s20, 1
        %s218 = sand.u32 %s56, 1
        %s219 = scalar_lea.sflag [#allocation4], %s218
        %s220 = sand.u32 %s56, 1
        %s221 = smul.addr %s220, 32
        %s222 = scalar_lea.vmem [#allocation3], %s221
        // Predicated region
        $region29: #{tpu_custom_call.1} parent=27 // pred_check
          %p223 = pneg %p69
        $region30: #{tpu_custom_call.1} parent=27 // pred_check_branch
          %225 = sbr.rel (%p223) target = $region32
        $region31: #{tpu_custom_call.1} parent=27 // pred_region
          %226 = dma.done %s219, 512
        $region32: #{tpu_custom_call.1} parent=27 // pred_fallthru
          _
        // Predicated region
        $region33: #{tpu_custom_call.1} parent=27 // pred_check
          %p227 = pneg %p95
        $region34: #{tpu_custom_call.1} parent=27 // pred_check_branch
          %229 = sbr.rel (%p227) target = $region36
        $region35: #{tpu_custom_call.1} parent=27 // pred_region
          %230 = dma.done [#allocation7], 1024
        $region36: #{tpu_custom_call.1} parent=27 // pred_fallthru
          _
        %s231 = sand.u32 %s56, 1
        %s232 = scalar_lea.sflag [#allocation4], %s231
        %s233 = sand.u32 %s56, 1
        %s234 = smul.addr %s233, 32
        %s235 = scalar_lea.vmem [#allocation3], %s234
        %p236 = pneg %p69
        %p237 = pneg %p66
        %p238 = pneg %p95
        %p239 = pneg %p92
        %p240 = pneg %p123
        %p241 = pneg %p120
        %s242 = sand.u32 %s110, 1
        %s243 = scalar_lea.sflag [#allocation5], %s242
        %s244 = sand.u32 %s110, 1
        %s245 = smul.addr %s244, 32
        %s246 = scalar_lea.vmem [#allocation8], %s245
        %p247 = pneg %p151
        %p248 = pneg %p148
        %s249 = sand.u32 %s138, 1
        %s250 = scalar_lea.sflag [#allocation10], %s249
        %s251 = sand.u32 %s138, 1
        %s252 = smul.addr %s251, 32
        %s253 = scalar_lea.vmem [#allocation9], %s252
        %s254 = smul.u32 4, %s32
        %s255 = smul.u32 4, %s32
        %s256 = smul.u32 4, %s31
        %s257 = smul.u32 4, %s31
        %p258 = scmp.eq.s32.totalorder %s32, 0
        // Predicated region
        $region37: #{tpu_custom_call.1} parent=27 // pred_check
          %p259 = pneg %p258
        $region38: #{tpu_custom_call.1} parent=27 // pred_check_branch
          %261 = sbr.rel (%p259) target = $region40
        $region39: #{tpu_custom_call.1} parent=27 // pred_region
          %262 = vst [vmem:[#allocation2] sm:$0xff] 0.0
          %263 = vst [vmem:[#allocation2 + $0x8] sm:$0xff] 0.0
          %264 = vst [vmem:[#allocation2 + $0x10] sm:$0xff] 0.0
          %265 = vst [vmem:[#allocation2 + $0x18] sm:$0xff] 0.0
          %266 = vst [vmem:[#allocation2 + $0x20] sm:$0xff] 0.0
          %267 = vst [vmem:[#allocation2 + $0x28] sm:$0xff] 0.0
          %268 = vst [vmem:[#allocation2 + $0x30] sm:$0xff] 0.0
          %269 = vst [vmem:[#allocation2 + $0x38] sm:$0xff] 0.0
        $region40: #{tpu_custom_call.1} parent=27 // pred_fallthru
          _
        %v270 = vld [vmem:[#allocation2] sm:$0xff]
        %v271 = vld [vmem:[#allocation2 + $0x8] sm:$0xff]
        %v272 = vld [vmem:[#allocation2 + $0x10] sm:$0xff]
        %v273 = vld [vmem:[#allocation2 + $0x18] sm:$0xff]
        %v274 = vld [vmem:[#allocation2 + $0x20] sm:$0xff]
        %v275 = vld [vmem:[#allocation2 + $0x28] sm:$0xff]
        %v276 = vld [vmem:[#allocation2 + $0x30] sm:$0xff]
        %v277 = vld [vmem:[#allocation2 + $0x38] sm:$0xff]
        %v278 = vld [vmem:[%s222] sm:$0xff]
        %v279 = vld [vmem:[%s222 + $0x8] sm:$0xff]
        %v280 = vld [vmem:[%s222 + $0x10] sm:$0xff]
        %v281 = vld [vmem:[%s222 + $0x18] sm:$0xff]
        %v282 = vld [vmem:[#allocation6] sm:$0xff]
        %v283 = vld [vmem:[#allocation6 + $0x8] sm:$0xff]
        %v284 = vld [vmem:[#allocation6 + $0x10] sm:$0xff]
        %v285 = vld [vmem:[#allocation6 + $0x18] sm:$0xff]
        %v286 = vld [vmem:[#allocation6 + $0x20] sm:$0xff]
        %v287 = vld [vmem:[#allocation6 + $0x28] sm:$0xff]
        %v288 = vld [vmem:[#allocation6 + $0x30] sm:$0xff]
        %v289 = vld [vmem:[#allocation6 + $0x38] sm:$0xff]
        %290 = vxpose.xlu0.b32.start [1/16] %v278, 128
        %291 = vxpose.xlu0.b32.cont [2/16] %v279, 128
        %292 = vxpose.xlu0.b32.cont [3/16] %v280, 128
        %293 = vxpose.xlu0.b32.cont [4/16] %v281, 128
        %294 = vxpose.xlu0.b32.cont [5/16] 0.0, 128
        %295 = vxpose.xlu0.b32.cont [6/16] 0.0, 128
        %296 = vxpose.xlu0.b32.cont [7/16] 0.0, 128
        %297 = vxpose.xlu0.b32.cont [8/16] 0.0, 128
        %298 = vxpose.xlu0.b32.cont [9/16] 0.0, 128
        %299 = vxpose.xlu0.b32.cont [10/16] 0.0, 128
        %300 = vxpose.xlu0.b32.cont [11/16] 0.0, 128
        %301 = vxpose.xlu0.b32.cont [12/16] 0.0, 128
        %302 = vxpose.xlu0.b32.cont [13/16] 0.0, 128
        %303 = vxpose.xlu0.b32.cont [14/16] 0.0, 128
        %304 = vxpose.xlu0.b32.cont [15/16] 0.0, 128
        %305 = vxpose.xlu0.b32.end [16/16] 0.0, 128
        %v306 = vpop.trf.xlu0
        %v307 = vpop.trf.xlu0
        %v308 = vpop.trf.xlu0
        %v309 = vpop.trf.xlu0
        %v310 = vpop.trf.xlu0
        %v311 = vpop.trf.xlu0
        %v312 = vpop.trf.xlu0
        %v313 = vpop.trf.xlu0
        %v314 = vpop.trf.xlu0
        %v315 = vpop.trf.xlu0
        %v316 = vpop.trf.xlu0
        %v317 = vpop.trf.xlu0
        %v318 = vpop.trf.xlu0
        %v319 = vpop.trf.xlu0
        %v320 = vpop.trf.xlu0
        %v321 = vpop.trf.xlu0
        %vm322 = vcmask 261120
        %v324 = vsel %vm322, %v306, 0
        %v327 = vsel %vm322, %v307, 0
        %v330 = vsel %vm322, %v308, 0
        %v333 = vsel %vm322, %v309, 0
        %335 = vmatprep.subr.mxu0 %v283
        %336 = vmatpush1.msra.mxu0 %v282
        %337 = vmatprep.subr.mxu0 %v285
        %338 = vmatpush1.msra.mxu0 %v284
        %339 = vmatprep.subr.mxu0 %v287
        %340 = vmatpush1.msra.mxu0 %v286
        %341 = vmatprep.subr.mxu0 %v289
        %342 = vmatpush1.msra.mxu0 %v288
        %343 = vmatprep.subr.mxu0 0.0
        %344 = vmatpush1.msra.mxu0 0.0
        %345 = vmatprep.subr.mxu0 0.0
        %346 = vmatpush1.msra.mxu0 0.0
        %347 = vmatprep.subr.mxu0 0.0
        %348 = vmatpush1.msra.mxu0 0.0
        %349 = vmatprep.subr.mxu0 0.0
        %350 = vmatpush1.msra.mxu0 0.0
        %351 = vmatprep.subr.mxu0 0.0
        %352 = vmatpush1.msra.mxu0 0.0
        %353 = vmatprep.subr.mxu0 0.0
        %354 = vmatpush1.msra.mxu0 0.0
        %355 = vmatprep.subr.mxu0 0.0
        %356 = vmatpush1.msra.mxu0 0.0
        %357 = vmatprep.subr.mxu0 0.0
        %358 = vmatpush1.msra.mxu0 0.0
        %359 = vmatprep.subr.mxu0 0.0
        %360 = vmatpush1.msra.mxu0 0.0
        %361 = vmatprep.subr.mxu0 0.0
        %362 = vmatpush1.msra.mxu0 0.0
        %363 = vmatprep.subr.mxu0 0.0
        %364 = vmatpush1.msra.mxu0 0.0
        %365 = vmatprep.subr.mxu0 0.0
        %366 = vmatpush1.msra.mxu0 0.0
        %367 = vmatprep.subr.mxu0 0.0
        %368 = vmatpush1.msra.mxu0 0.0
        %369 = vmatprep.subr.mxu0 0.0
        %370 = vmatpush1.msra.mxu0 0.0
        %371 = vmatprep.subr.mxu0 0.0
        %372 = vmatpush1.msra.mxu0 0.0
        %373 = vmatprep.subr.mxu0 0.0
        %374 = vmatpush1.msra.mxu0 0.0
        %375 = vmatprep.subr.mxu0 0.0
        %376 = vmatpush1.msra.mxu0 0.0
        %377 = vmatprep.subr.mxu0 0.0
        %378 = vmatpush1.msra.mxu0 0.0
        %379 = vmatprep.subr.mxu0 0.0
        %380 = vmatpush1.msra.mxu0 0.0
        %381 = vmatprep.subr.mxu0 0.0
        %382 = vmatpush1.msra.mxu0 0.0
        %383 = vmatprep.subr.mxu0 0.0
        %384 = vmatpush1.msra.mxu0 0.0
        %385 = vmatprep.subr.mxu0 0.0
        %386 = vmatpush1.msra.mxu0 0.0
        %387 = vmatprep.subr.mxu0 0.0
        %388 = vmatpush1.msra.mxu0 0.0
        %389 = vmatprep.subr.mxu0 0.0
        %390 = vmatpush1.msra.mxu0 0.0
        %391 = vmatprep.subr.mxu0 0.0
        %392 = vmatpush1.msra.mxu0 0.0
        %393 = vmatprep.subr.mxu0 0.0
        %394 = vmatpush1.msra.mxu0 0.0
        %395 = vmatprep.subr.mxu0 0.0
        %396 = vmatpush1.msra.mxu0 0.0
        %397 = vmatprep.subr.mxu0 0.0
        %398 = vmatpush1.msra.mxu0 0.0
        %399 = vmatprep.mubr.f32.mxu0 0.0
        %400 = vmatmul.mubr.f32.gmra.mrb[0].mxu0 %v324
        %v401 = vpop.f32.mrb[0].mxu0
        %v402 = vadd.f32 0.0, %v401
        %v403 = vpop.f32.mrb[0].mxu0
        %v404 = vadd.f32 0.0, %v403
        %405 = vmatprep.mubr.f32.mxu0 0.0
        %406 = vmatmul.mubr.f32.gmra.mrb[0].mxu0 %v327
        %v407 = vpop.f32.mrb[0].mxu0
        %v408 = vadd.f32 0.0, %v407
        %v409 = vpop.f32.mrb[0].mxu0
        %v410 = vadd.f32 0.0, %v409
        %411 = vmatprep.mubr.f32.mxu0 0.0
        %412 = vmatmul.mubr.f32.gmra.mrb[0].mxu0 %v330
        %v413 = vpop.f32.mrb[0].mxu0
        %v414 = vadd.f32 0.0, %v413
        %v415 = vpop.f32.mrb[0].mxu0
        %v416 = vadd.f32 0.0, %v415
        %417 = vmatprep.mubr.f32.mxu0 0.0
        %418 = vmatmul.mubr.f32.gmra.mrb[0].mxu0 %v333
        %v419 = vpop.f32.mrb[0].mxu0
        %v420 = vadd.f32 0.0, %v419
        %v421 = vpop.f32.mrb[0].mxu0
        %v422 = vadd.f32 0.0, %v421
        %423 = vdwg.mxu0
        %v424 = vadd.f32 %v270, %v402
        %v425 = vadd.f32 %v271, %v404
        %v426 = vadd.f32 %v272, %v408
        %v427 = vadd.f32 %v273, %v410
        %v428 = vadd.f32 %v274, %v414
        %v429 = vadd.f32 %v275, %v416
        %v430 = vadd.f32 %v276, %v420
        %v431 = vadd.f32 %v277, %v422
        %432 = vst [vmem:[#allocation2] sm:$0xff] %v424
        %433 = vst [vmem:[#allocation2 + $0x8] sm:$0xff] %v425
        %434 = vst [vmem:[#allocation2 + $0x10] sm:$0xff] %v426
        %435 = vst [vmem:[#allocation2 + $0x18] sm:$0xff] %v427
        %436 = vst [vmem:[#allocation2 + $0x20] sm:$0xff] %v428
        %437 = vst [vmem:[#allocation2 + $0x28] sm:$0xff] %v429
        %438 = vst [vmem:[#allocation2 + $0x30] sm:$0xff] %v430
        %439 = vst [vmem:[#allocation2 + $0x38] sm:$0xff] %v431
        // Predicated region
        $region41: #{tpu_custom_call.1} parent=27 // pred_check
          %p440 = pneg %p258
        $region42: #{tpu_custom_call.1} parent=27 // pred_check_branch
          %442 = sbr.rel (%p440) target = $region44
        $region43: #{tpu_custom_call.1} parent=27 // pred_region
          %v443 = vld [vmem:[#allocation2] sm:$0xff]
          %v444 = vld [vmem:[#allocation2 + $0x8] sm:$0xff]
          %v445 = vld [vmem:[#allocation2 + $0x10] sm:$0xff]
          %v446 = vld [vmem:[#allocation2 + $0x18] sm:$0xff]
          %v447 = vld [vmem:[#allocation2 + $0x20] sm:$0xff]
          %v448 = vld [vmem:[#allocation2 + $0x28] sm:$0xff]
          %v449 = vld [vmem:[#allocation2 + $0x30] sm:$0xff]
          %v450 = vld [vmem:[#allocation2 + $0x38] sm:$0xff]
          %451 = vst [vmem:[%s246] sm:$0xff] %v443
          %452 = vst [vmem:[%s246 + $0x8] sm:$0xff] %v445
          %453 = vst [vmem:[%s246 + $0x10] sm:$0xff] %v447
          %454 = vst [vmem:[%s246 + $0x18] sm:$0xff] %v449
          %v455 = vsub.f32 0.0, %v444
          %v456 = vsub.f32 0.0, %v446
          %v457 = vsub.f32 0.0, %v448
          %v458 = vsub.f32 0.0, %v450
          %459 = vst [vmem:[%s253] sm:$0xff] %v455
          %460 = vst [vmem:[%s253 + $0x8] sm:$0xff] %v456
          %461 = vst [vmem:[%s253 + $0x10] sm:$0xff] %v457
          %462 = vst [vmem:[%s253 + $0x18] sm:$0xff] %v458
        $region44: #{tpu_custom_call.1} parent=27 // pred_fallthru
          _
        %s463 = sand.u32 %s110, 1
        %s464 = scalar_lea.sflag [#allocation5], %s463
        %s465 = sand.u32 %s110, 1
        %s466 = smul.addr %s465, 32
        %s467 = scalar_lea.vmem [#allocation8], %s466
        %s468 = sand.u32 %s138, 1
        %s469 = scalar_lea.sflag [#allocation10], %s468
        %s470 = sand.u32 %s138, 1
        %s471 = smul.addr %s470, 32
        %s472 = scalar_lea.vmem [#allocation9], %s471
        // Predicated region
        $region45: #{tpu_custom_call.1} parent=27 // pred_check
          %p473 = pneg %p120
        $region46: #{tpu_custom_call.1} parent=27 // pred_check_branch
          %475 = sbr.rel (%p473) target = $region48
        $region47: #{tpu_custom_call.1} parent=27 // pred_region
          %s476 = smul.u32 4, %s31
          %s478 = ssub.s32 512, 512
          %479 = vsyncadd %s464, %s478
          %s480 = smul.addr %s30, 4
          %s481 = sadd.s32 %s476, %s480
          %s482 = smul.addr %s481, 128
          %s483 = scalar_lea.hbm %s2, %s482
          %s484 = sshll.u32 %s467, 4
          %s485 = int_to_ptr.vmem [resolvable:$true] %s484
          %490 = dma.vmem_to_hbm [thread:$0]  %s485, 512, %s483, %s464, 128, 128, 8
        $region48: #{tpu_custom_call.1} parent=27 // pred_fallthru
          _
        // Predicated region
        $region49: #{tpu_custom_call.1} parent=27 // pred_check
          %p491 = pneg %p148
        $region50: #{tpu_custom_call.1} parent=27 // pred_check_branch
          %493 = sbr.rel (%p491) target = $region52
        $region51: #{tpu_custom_call.1} parent=27 // pred_region
          %s494 = smul.u32 4, %s31
          %s496 = ssub.s32 512, 512
          %497 = vsyncadd %s469, %s496
          %s498 = smul.addr %s30, 4
          %s499 = sadd.s32 %s494, %s498
          %s500 = smul.addr %s499, 128
          %s501 = scalar_lea.hbm %s3, %s500
          %s502 = sshll.u32 %s472, 4
          %s503 = int_to_ptr.vmem [resolvable:$true] %s502
          %508 = dma.vmem_to_hbm [thread:$0]  %s503, 512, %s501, %s469, 128, 128, 8
        $region52: #{tpu_custom_call.1} parent=27 // pred_fallthru
          _
      $region28: #{tpu_custom_call.1} parent=5 // pred_fallthru
        _
      %p509 = scmp.le.s32.totalorder 2, %s20
      // Predicated region
      $region53: #{tpu_custom_call.1} parent=5 // pred_check
        %p510 = pneg %p509
      $region54: #{tpu_custom_call.1} parent=5 // pred_check_branch
        %512 = sbr.rel (%p510) target = $region56
      $region55: #{tpu_custom_call.1} parent=5 // pred_region
        %s513 = ssub.s32 %s20, 2
        // Predicated region
        $region57: #{tpu_custom_call.1} parent=55 // pred_check
          %p514 = pneg %p126
        $region58: #{tpu_custom_call.1} parent=55 // pred_check_branch
          %516 = sbr.rel (%p514) target = $region60
        $region59: #{tpu_custom_call.1} parent=55 // pred_region
          %s517 = sand.u32 %s111, 1
          %s518 = scalar_lea.sflag [#allocation5], %s517
          %s519 = sand.u32 %s111, 1
          %s520 = smul.addr %s519, 32
          %s521 = scalar_lea.vmem [#allocation8], %s520
          %522 = dma.done %s518, 512
        $region60: #{tpu_custom_call.1} parent=55 // pred_fallthru
          _
        // Predicated region
        $region61: #{tpu_custom_call.1} parent=55 // pred_check
          %p523 = pneg %p154
        $region62: #{tpu_custom_call.1} parent=55 // pred_check_branch
          %525 = sbr.rel (%p523) target = $region64
        $region63: #{tpu_custom_call.1} parent=55 // pred_region
          %s526 = sand.u32 %s139, 1
          %s527 = scalar_lea.sflag [#allocation10], %s526
          %s528 = sand.u32 %s139, 1
          %s529 = smul.addr %s528, 32
          %s530 = scalar_lea.vmem [#allocation9], %s529
          %531 = dma.done %s527, 512
        $region64: #{tpu_custom_call.1} parent=55 // pred_fallthru
          _
      $region56: #{tpu_custom_call.1} parent=5 // pred_fallthru
        _
    $region6: #{tpu_custom_call.1} parent=1 // loop_footer
      %s24 = sadd.s32 1, %s20
    $region7: #{tpu_custom_call.1} parent=1 // loop_footer_branch
      %19 = sbr.rel target = $region3
    $region8: #{tpu_custom_call.1} parent=1 // loop_exit
      _
    %532 = vsyncpa [#allocation4], 1
    %s533 = scalar_lea.sflag [#allocation4], 1
    %534 = vsyncpa %s533, 1
    %535 = vsyncpa [#allocation7], 1
    %536 = vsyncpa [#allocation5], 1
    %s537 = scalar_lea.sflag [#allocation5], 1
    %538 = vsyncpa %s537, 1
    %539 = vsyncpa [#allocation10], 1
    %s540 = scalar_lea.sflag [#allocation10], 1
    %541 = vsyncpa %s540, 1

</llo_original>
